<compile_context>
chip_gen: v7x
topology: tpu7x:2x2x1
jax: 0.10.0
libtpu: 0.0.40
codegen_flags: <defaults>
</compile_context>

<pallas_src>
import jax
import jax.numpy as jnp
from jax.experimental import pallas as pl
from jax.experimental.pallas import tpu as pltpu


# dtype-aware sublane granularity (sub-32-bit dtypes pack along sublanes)
_SUBLANE_FOR_ITEMSIZE = {8: 8, 4: 8, 2: 16, 1: 32}

_TARGET_TILE_BYTES = 2 * 1024 * 1024  # ~2 MiB per in/out tile


def _add_one_kernel(x_ref, o_ref):
    # Pure VPU elementwise add on the current tile.
    o_ref[...] = x_ref[...] + jnp.asarray(1, dtype=x_ref.dtype)


def _pick_layout(n: int):
    """Pick a lane-dense (rows, lanes) view of n elements, preferring the
    widest lane extent that divides n exactly (no padding pass)."""
    for lanes in (2048, 1024, 512, 256, 128):
        if n % lanes == 0:
            return n // lanes, lanes, 0
    lanes = 512                          # ragged total: minimal pad (< 512 elems)
    rows = -(-n // lanes)
    return rows, lanes, rows * lanes - n


def _choose_block_rows(rows: int, lanes: int, itemsize: int, sublane: int):
    """Row-tile size: full extent for small inputs, else ~2 MiB tiles rounded
    down to the dtype's sublane multiple."""
    max_rows = max(
        sublane,
        (_TARGET_TILE_BYTES // (lanes * itemsize)) // sublane * sublane,
    )
    if rows <= max_rows:
        return rows                      # single full-extent block (exempt rule)
    return max_rows


def _add_one_impl(x: jax.Array) -> jax.Array:
    orig_shape = x.shape
    dtype = x.dtype
    n = x.size
    if n == 0:
        return x

    itemsize = jnp.dtype(dtype).itemsize
    sublane = _SUBLANE_FOR_ITEMSIZE.get(itemsize, 8)

    rows, lanes, pad = _pick_layout(n)

    flat = x.reshape(-1)
    if pad:
        # Only hit when n is not a multiple of 128 (e.g. the scalar case).
        flat = jnp.pad(flat, (0, pad))
    x2d = flat.reshape(rows, lanes)

    block_rows = _choose_block_rows(rows, lanes, itemsize, sublane)
    grid = (pl.cdiv(rows, block_rows),)

    out2d = pl.pallas_call(
        _add_one_kernel,
        out_shape=jax.ShapeDtypeStruct((rows, lanes), dtype),
        grid_spec=pltpu.PrefetchScalarGridSpec(
            num_scalar_prefetch=0,
            grid=grid,
            in_specs=[pl.BlockSpec((block_rows, lanes), lambda i: (i, 0))],
            out_specs=pl.BlockSpec((block_rows, lanes), lambda i: (i, 0)),
        ),
        input_output_aliases={0: 0},     # in-place when the buffer is donatable
        compiler_params=pltpu.CompilerParams(
            # Row-tile axis is independent -> shardable across TensorCores on
            # multi-TC parts (v7x); harmless on single-TC chips.
            dimension_semantics=("parallel",),
            vmem_limit_bytes=32 * 1024 * 1024,
        ),
    )(x2d)

    out_flat = out2d.reshape(-1)
    if pad:
        out_flat = out_flat[:n]
    return out_flat.reshape(orig_shape)


# jit so the reshape glue and the aliased custom call fuse cleanly.
add_one = jax.jit(_add_one_impl)


if __name__ == "__main__":
    key = jax.random.PRNGKey(0)
    # Small NCHW input consistent with a conv-style module interface.
    x = jax.random.normal(key, (2, 4, 16, 16), dtype=jnp.float32)

    y = jax.block_until_ready(add_one(x))
    assert y.shape == x.shape and y.dtype == x.dtype
    assert jnp.allclose(y, x + 1.0, atol=1e-6), "mismatch vs reference"

    # Scalar case mirroring `x = torch.tensor(1.0)` from the spec.
    s = jnp.asarray(1.0, dtype=jnp.float32)
    ys = jax.block_until_ready(add_one(s))
    assert jnp.allclose(ys, 2.0, atol=1e-6)

    print("KERNEL_OK")
</pallas_src>

<mosaic_0001>
module attributes {stable_mosaic.version = 11 : i64} {
  func.func @_add_one_kernel(%arg0: i32, %arg1: memref<1x2048xf32, #tpu.memory_space<vmem>>, %arg2: memref<1x2048xf32, #tpu.memory_space<vmem>>) attributes {dimension_semantics = [#tpu.dimension_semantics<parallel>], iteration_bounds = array<i64: 1>, scalar_prefetch = 0 : i64, scratch_operands = 0 : i64, tpu.core_type = #tpu.core_type<tc>, window_params = [{transform_indices = @transform_0, window_bounds = array<i64: 1, 2048>}, {transform_indices = @transform_1, window_bounds = array<i64: 1, 2048>}]} {
    %c0 = arith.constant 0 : index
    %c0_0 = arith.constant 0 : index
    %0 = vector.load %arg1[%c0, %c0_0] : memref<1x2048xf32, #tpu.memory_space<vmem>>, vector<1x2048xf32>
    %cst = arith.constant 1.000000e+00 : f32
    %1 = vector.broadcast %cst : f32 to vector<1x2048xf32>
    %2 = arith.addf %0, %1 : vector<1x2048xf32>
    %c0_1 = arith.constant 0 : index
    %c0_2 = arith.constant 0 : index
    %3 = vector.load %arg2[%c0_1, %c0_2] : memref<1x2048xf32, #tpu.memory_space<vmem>>, vector<1x2048xf32>
    tpu.vector_store %arg2[%c0_1, %c0_2], %2 {strides = array<i32>} : memref<1x2048xf32, #tpu.memory_space<vmem>>, vector<1x2048xf32>,
    return
  }
  func.func @transform_0(%arg0: i32) -> (i32, i32) {
    %c0_i32 = arith.constant 0 : i32
    %c0_i32_0 = arith.constant 0 : i32
    return %arg0, %c0_i32 : i32, i32
  }
  func.func @transform_1(%arg0: i32) -> (i32, i32) {
    %c0_i32 = arith.constant 0 : i32
    %c0_i32_0 = arith.constant 0 : i32
    return %arg0, %c0_i32 : i32, i32
  }
}

</mosaic_0001>

<llo_original>
// kernel: _add_one_impl.1
$region0: #{_add_one_impl.1}
  #allocation0 [shape = 'u32[]', space=smem, size = 0x4, offset = 0x4, fixed_abs, tag = 'smem constant byte address 0x4 - core index']
  #allocation1 [shape = 'u32[144,128]{1,0:T(1,128)}', space=vmem, size = 0x12000, scoped, tag = 'internal scratch']
  %s0 = inlined_call_operand.vmem [shape: f32[1,2048], index: 0, kind: input, shape index: {}, may-alias: {0,1}]
  %s1 = inlined_call_operand.vmem [shape: f32[1,2048], index: 1, kind: output, shape index: {}, may-alias: {0,1}]
  %s2 = sld [smem:[#allocation0]]
  $region14: #{_add_one_impl.1} parent=0
    _
  %s4 = ssub.s32 1, %s2
  %s5 = scalar_select 0, %s4, %s2
  // Predicated region
  $region2: #{_add_one_impl.1} parent=0 // pred_check
    _
  $region3: #{_add_one_impl.1} parent=0 // pred_check_branch
    %7 = sbr.rel (0) target = $region5
  $region4: #{_add_one_impl.1} parent=0 // pred_region
    _
  $region5: #{_add_one_impl.1} parent=0 // pred_fallthru
    _
  %v8 = vld [vmem:[%s0] sm:$0xff]
  %v9 = vld [vmem:[%s0 + $0x8] sm:$0xff]
  %v10 = vadd.f32 %v8, 1.0
  %v11 = vadd.f32 %v9, 1.0
  %12 = vst [vmem:[%s1] sm:$0xff] %v10
  %13 = vst [vmem:[%s1 + $0x8] sm:$0xff] %v11
  // Predicated region
  $region6: #{_add_one_impl.1} parent=0 // pred_check
    _
  $region7: #{_add_one_impl.1} parent=0 // pred_check_branch
    %15 = sbr.rel (0) target = $region9
  $region8: #{_add_one_impl.1} parent=0 // pred_region
    _
  $region9: #{_add_one_impl.1} parent=0 // pred_fallthru
    _
  // Predicated region
  $region10: #{_add_one_impl.1} parent=0 // pred_check
    _
  $region11: #{_add_one_impl.1} parent=0 // pred_check_branch
    %17 = sbr.rel (0) target = $region13
  $region12: #{_add_one_impl.1} parent=0 // pred_region
    _
  $region13: #{_add_one_impl.1} parent=0 // pred_fallthru
    _

</llo_original>
